<compile_context>
chip_gen: v7x
topology: tpu7x:2x2x1
jax: 0.10.0
libtpu: 0.0.40
codegen_flags: <defaults>
</compile_context>

<pallas_src>
import functools

import jax
import jax.numpy as jnp
from jax.experimental import pallas as pl
from jax.experimental.pallas import tpu as pltpu


def _round_up(n, m):
    return (n + m - 1) // m * m


# ---------------------------------------------------------------------------
# Fused kernel: conv (im2col matmul) + BatchNorm(batch stats) + ReLU
# ---------------------------------------------------------------------------
def _conv_block_kernel(x_ref, w_ref, g_ref, beta_ref, o_ref,
                       yres_ref, psum_ref, psq_ref, scale_ref, shift_ref,
                       *, inv_n, eps, y_resident):
    p = pl.program_id(0)            # 0: conv + stats accumulation, 1: normalize+store
    j = pl.program_id(1)            # lane-tile index
    tile = o_ref.shape[1]

    def conv():
        # Conv1d as one MXU matmul: contraction = C_in*K, lanes = flattened (B, L).
        return jnp.dot(w_ref[...], x_ref[...], preferred_element_type=jnp.float32)

    @pl.when((p == 0) & (j == 0))
    def _init():
        psum_ref[...] = jnp.zeros_like(psum_ref)
        psq_ref[...] = jnp.zeros_like(psq_ref)

    @pl.when(p == 0)
    def _accumulate():
        y = conv()                                  # (O_pad, tile) f32
        if y_resident:
            yres_ref[j] = y                         # keep conv result in VMEM
        y2 = y * y
        # 128-lane-aligned register partial sums: pure VPU adds, no per-element XLU
        # work in the hot loop.  Zero-padded lanes/rows are exactly 0 (bias dropped),
        # so no validity mask is needed.
        ps = y[:, 0:128]
        pq = y2[:, 0:128]
        for c in range(128, tile, 128):
            ps = ps + y[:, c:c + 128]
            pq = pq + y2[:, c:c + 128]
        psum_ref[...] += ps
        psq_ref[...] += pq

    @pl.when((p == 1) & (j == 0))
    def _finalize_stats():
        total = jnp.sum(psum_ref[...], axis=1, keepdims=True)      # (O_pad, 1)
        total_sq = jnp.sum(psq_ref[...], axis=1, keepdims=True)
        mean = total * inv_n
        var = total_sq * inv_n - mean * mean                       # biased variance
        scale = g_ref[...] * jax.lax.rsqrt(var + eps)
        scale_ref[...] = scale
        shift_ref[...] = beta_ref[...] - mean * scale

    @pl.when(p == 1)
    def _normalize_store():
        y = yres_ref[j] if y_resident else conv()
        o_ref[...] = jnp.maximum(y * scale_ref[...] + shift_ref[...],
                                 0.0).astype(o_ref.dtype)


# ---------------------------------------------------------------------------
# Wrapper
# ---------------------------------------------------------------------------
def conv_block_forward(x, weight, bias, gamma, beta, *, stride=1, eps=1e-5,
                       lane_tile=1024, compute_dtype=jnp.bfloat16,
                       vmem_budget_bytes=40 * 2**20):
    """ConvBlock forward pass.

    x: (B, C_in, L); weight: (O, C_in, K); bias/gamma/beta: (O,).
    Returns (B, O, L) float32 (Conv1dSamePadding keeps the length at L for any
    stride, per the PyTorch reference formula).  BatchNorm uses training-mode
    batch statistics (a freshly constructed nn.Module is in train mode).
    NOTE: `bias` is accepted for API parity but not used — under training-mode
    BatchNorm the conv bias cancels exactly in the normalized output.
    """
    del bias
    B, C_in, L = x.shape
    O, C_in_w, K = weight.shape
    assert C_in_w == C_in

    # ---- Conv1dSamePadding input prep (dilation=1, groups=1) ---------------
    pad_total = (L - 1) * stride - L + (K - 1) + 1
    assert pad_total >= 0
    pad_l = pad_total // 2
    pad_r = pad_total - pad_l          # PyTorch puts the odd extra pad on the right
    L_out = (L + pad_total - K) // stride + 1       # == L by construction

    # Cast BEFORE the gather so the K-inflated im2col buffer is written and read
    # at half width.
    x_c = x.astype(compute_dtype)
    x_pad = jnp.pad(x_c, ((0, 0), (0, 0), (pad_l, pad_r)))

    # ---- im2col: taps -> contraction axis, (B, L_out) -> lane axis ---------
    gather = jnp.arange(K)[:, None] + (jnp.arange(L_out) * stride)[None, :]
    patches = x_pad[:, :, gather]                               # (B, C_in, K, L_out)
    x_col = patches.transpose(1, 2, 0, 3).reshape(C_in * K, B * L_out)

    # ---- tiling / padding ---------------------------------------------------
    n_cols = B * L_out
    lane_tile = max(128, _round_up(int(lane_tile), 128))        # enforce (8,128) rule
    tile = min(lane_tile, _round_up(n_cols, 128))
    n_pad = _round_up(n_cols, tile)
    n_tiles = n_pad // tile

    sub = 16                                                    # sublane packing
    CK = C_in * K
    CK_pad = _round_up(CK, sub)
    O_pad = _round_up(O, sub)

    x_col = jnp.pad(x_col, ((0, CK_pad - CK), (0, n_pad - n_cols)))
    w2d = jnp.pad(weight.reshape(O, CK).astype(compute_dtype),
                  ((0, O_pad - O), (0, CK_pad - CK)))
    g2d = jnp.pad(gamma.astype(jnp.float32), (0, O_pad - O)).reshape(O_pad, 1)
    beta2d = jnp.pad(beta.astype(jnp.float32), (0, O_pad - O)).reshape(O_pad, 1)

    # ---- VMEM accounting: resident conv result when it fits ----------------
    isz = jnp.dtype(compute_dtype).itemsize
    base_bytes = (2 * CK_pad * tile * isz        # double-buffered x_col tiles
                  + 2 * O_pad * CK_pad * isz     # weights
                  + 2 * O_pad * tile * 4         # double-buffered output tiles
                  + 4 * O_pad * 128 * 4)         # stats scratches (generous)
    y_bytes = n_tiles * O_pad * tile * 4
    y_resident = (base_bytes + y_bytes) <= vmem_budget_bytes
    vmem_used = base_bytes + (y_bytes if y_resident else 0)
    vmem_limit = int(min(64 * 2**20, max(32 * 2**20, int(1.25 * vmem_used))))

    yres_shape = (n_tiles, O_pad, tile) if y_resident else (1, 8, 128)

    if y_resident:
        # Phase 1 never touches x_col: pin its block so it is not re-fetched.
        x_map = lambda p, j: (0, (1 - p) * j)
    else:
        x_map = lambda p, j: (0, j)

    kernel = functools.partial(_conv_block_kernel,
                               inv_n=1.0 / float(n_cols), eps=float(eps),
                               y_resident=y_resident)

    y = pl.pallas_call(
        kernel,
        out_shape=jax.ShapeDtypeStruct((O_pad, n_pad), jnp.float32),
        grid=(2, n_tiles),               # (phase, lane tile)
        in_specs=[
            pl.BlockSpec((CK_pad, tile), x_map),
            pl.BlockSpec((O_pad, CK_pad), lambda p, j: (0, 0)),
            pl.BlockSpec((O_pad, 1), lambda p, j: (0, 0)),
            pl.BlockSpec((O_pad, 1), lambda p, j: (0, 0)),
        ],
        # Output block pinned during phase 0 -> no garbage writebacks.
        out_specs=pl.BlockSpec((O_pad, tile), lambda p, j: (0, p * j)),
        scratch_shapes=[
            pltpu.VMEM(yres_shape, jnp.float32),     # resident conv result (or dummy)
            pltpu.VMEM((O_pad, 128), jnp.float32),   # partial sums
            pltpu.VMEM((O_pad, 128), jnp.float32),   # partial sums of squares
            pltpu.VMEM((O_pad, 1), jnp.float32),     # BN scale
            pltpu.VMEM((O_pad, 1), jnp.float32),     # BN shift
        ],
        compiler_params=pltpu.CompilerParams(
            # Both axes are sequential: BN statistics accumulate across the lane
            # tiles and must complete before phase 1 normalizes.
            dimension_semantics=("arbitrary", "arbitrary"),
            vmem_limit_bytes=vmem_limit),
    )(x_col, w2d, g2d, beta2d)

    # (O_pad, n_pad) -> (B, O, L_out).  When ConvBlocks are chained, keep the
    # collapsed channels-major (O, B*L) layout between blocks instead of paying
    # this transpose per block.
    return y[:O, :n_cols].reshape(O, B, L_out).transpose(1, 0, 2)


# ---------------------------------------------------------------------------
# Pure-JAX reference for correctness checking (mirrors the PyTorch module,
# including the conv bias, to verify that dropping the bias in-kernel is exact).
# ---------------------------------------------------------------------------
def _reference_forward(x, weight, bias, gamma, beta, *, stride=1, eps=1e-5):
    B, C_in, L = x.shape
    O, _, K = weight.shape
    pad_total = (L - 1) * stride - L + (K - 1) + 1
    pad_l = pad_total // 2
    pad_r = pad_total - pad_l
    x_pad = jnp.pad(x, ((0, 0), (0, 0), (pad_l, pad_r)))
    y = jax.lax.conv_general_dilated(
        x_pad, weight, window_strides=(stride,), padding="VALID",
        dimension_numbers=("NCH", "OIH", "NCH"))
    y = y + bias[None, :, None]
    mean = jnp.mean(y, axis=(0, 2), keepdims=True)
    var = jnp.mean((y - mean) ** 2, axis=(0, 2), keepdims=True)
    y = (y - mean) * jax.lax.rsqrt(var + eps)
    y = y * gamma[None, :, None] + beta[None, :, None]
    return jnp.maximum(y, 0.0)


if __name__ == "__main__":
    B, C_in, L = 2, 4, 16
    out_channels, kernel_size = 8, 3

    key = jax.random.PRNGKey(0)
    kx, kw, kb, kg, kbeta = jax.random.split(key, 5)
    x = jax.random.normal(kx, (B, C_in, L), jnp.float32)
    weight = 0.2 * jax.random.normal(kw, (out_channels, C_in, kernel_size), jnp.float32)
    bias = 0.1 * jax.random.normal(kb, (out_channels,), jnp.float32)
    gamma = 1.0 + 0.1 * jax.random.normal(kg, (out_channels,), jnp.float32)
    beta = 0.1 * jax.random.normal(kbeta, (out_channels,), jnp.float32)

    fwd = jax.jit(conv_block_forward,
                  static_argnames=("stride", "eps", "lane_tile", "compute_dtype",
                                   "vmem_budget_bytes"))

    # 1) Default path: bf16 operands, resident conv result, stride=1.
    out = jax.block_until_ready(fwd(x, weight, bias, gamma, beta, stride=1))
    assert out.shape == (B, out_channels, L), out.shape
    assert bool(jnp.all(jnp.isfinite(out)))
    ref = _reference_forward(x, weight, bias, gamma, beta, stride=1)
    assert jnp.allclose(out, ref, rtol=5e-2, atol=5e-2), \
        float(jnp.max(jnp.abs(out - ref)))

    # 2) f32 operands (tight numerics check) + multi-lane-tile path.
    x2 = jax.random.normal(jax.random.PRNGKey(1), (2, 4, 300), jnp.float32)
    out2 = jax.block_until_ready(fwd(x2, weight, bias, gamma, beta, stride=1,
                                     lane_tile=128, compute_dtype=jnp.float32))
    ref2 = _reference_forward(x2, weight, bias, gamma, beta, stride=1)
    assert out2.shape == ref2.shape
    assert jnp.allclose(out2, ref2, rtol=1e-3, atol=1e-3), \
        float(jnp.max(jnp.abs(out2 - ref2)))

    # 3) Non-resident fallback (phase-1 recompute) + stride=2.
    out3 = jax.block_until_ready(fwd(x, weight, bias, gamma, beta, stride=2,
                                     vmem_budget_bytes=0))
    ref3 = _reference_forward(x, weight, bias, gamma, beta, stride=2)
    assert out3.shape == ref3.shape == (B, out_channels, L)
    assert jnp.allclose(out3, ref3, rtol=5e-2, atol=5e-2), \
        float(jnp.max(jnp.abs(out3 - ref3)))

    print("KERNEL_OK")
</pallas_src>

<mosaic_0001>
module attributes {stable_mosaic.version = 11 : i64} {
  func.func @_conv_block_kernel(%arg0: i32, %arg1: i32, %arg2: memref<16x128xbf16, #tpu.memory_space<vmem>>, %arg3: memref<16x16xbf16, #tpu.memory_space<vmem>>, %arg4: memref<16x1xf32, #tpu.memory_space<vmem>>, %arg5: memref<16x1xf32, #tpu.memory_space<vmem>>, %arg6: memref<16x128xf32, #tpu.memory_space<vmem>>, %arg7: memref<1x16x128xf32, #tpu.memory_space<vmem>>, %arg8: memref<16x128xf32, #tpu.memory_space<vmem>>, %arg9: memref<16x128xf32, #tpu.memory_space<vmem>>, %arg10: memref<16x1xf32, #tpu.memory_space<vmem>>, %arg11: memref<16x1xf32, #tpu.memory_space<vmem>>) attributes {dimension_semantics = [#tpu.dimension_semantics<arbitrary>, #tpu.dimension_semantics<arbitrary>], iteration_bounds = array<i64: 2, 1>, scalar_prefetch = 0 : i64, scratch_operands = 5 : i64, tpu.core_type = #tpu.core_type<tc>, window_params = [{transform_indices = @transform_0, window_bounds = array<i64: 16, 128>}, {pipeline_mode = #tpu.pipeline_mode<synchronous>, transform_indices = @transform_1, window_bounds = array<i64: 16, 16>}, {pipeline_mode = #tpu.pipeline_mode<synchronous>, transform_indices = @transform_2, window_bounds = array<i64: 16, 1>}, {pipeline_mode = #tpu.pipeline_mode<synchronous>, transform_indices = @transform_3, window_bounds = array<i64: 16, 1>}, {transform_indices = @transform_4, window_bounds = array<i64: 16, 128>}]} {
    %c0_i32 = arith.constant 0 : i32
    %0 = arith.cmpi eq, %arg0, %c0_i32 : i32
    %c0_i32_0 = arith.constant 0 : i32
    %1 = arith.cmpi eq, %arg1, %c0_i32_0 : i32
    %2 = arith.andi %0, %1 : i1
    %3 = arith.extui %2 : i1 to i32
    %c0_i32_1 = arith.constant 0 : i32
    %4 = arith.cmpi ne, %3, %c0_i32_1 : i32
    scf.if %4 {
      %cst = arith.constant 0.000000e+00 : f32
      %16 = vector.broadcast %cst : f32 to vector<16x128xf32>
      %c0 = arith.constant 0 : index
      %c0_8 = arith.constant 0 : index
      %17 = vector.load %arg8[%c0, %c0_8] : memref<16x128xf32, #tpu.memory_space<vmem>>, vector<16x128xf32>
      tpu.vector_store %arg8[%c0, %c0_8], %16 {strides = array<i32>} : memref<16x128xf32, #tpu.memory_space<vmem>>, vector<16x128xf32>,
      %cst_9 = arith.constant 0.000000e+00 : f32
      %18 = vector.broadcast %cst_9 : f32 to vector<16x128xf32>
      %c0_10 = arith.constant 0 : index
      %c0_11 = arith.constant 0 : index
      %19 = vector.load %arg9[%c0_10, %c0_11] : memref<16x128xf32, #tpu.memory_space<vmem>>, vector<16x128xf32>
      tpu.vector_store %arg9[%c0_10, %c0_11], %18 {strides = array<i32>} : memref<16x128xf32, #tpu.memory_space<vmem>>, vector<16x128xf32>,
    } else {
    }
    %c0_i32_2 = arith.constant 0 : i32
    %5 = arith.cmpi eq, %arg0, %c0_i32_2 : i32
    %6 = arith.extui %5 : i1 to i32
    %c0_i32_3 = arith.constant 0 : i32
    %7 = arith.cmpi ne, %6, %c0_i32_3 : i32
    scf.if %7 {
      %c0 = arith.constant 0 : index
      %c0_8 = arith.constant 0 : index
      %16 = vector.load %arg3[%c0, %c0_8] : memref<16x16xbf16, #tpu.memory_space<vmem>>, vector<16x16xbf16>
      %c0_9 = arith.constant 0 : index
      %c0_10 = arith.constant 0 : index
      %17 = vector.load %arg2[%c0_9, %c0_10] : memref<16x128xbf16, #tpu.memory_space<vmem>>, vector<16x128xbf16>
      %cst = arith.constant dense<0.000000e+00> : vector<16x128xf32>
      %18 = tpu.matmul %16, %17, %cst {dimension_numbers = #tpu.dot_dimension_numbers<[1], [0], [0], [1], [0, 0, 1, 1], [], []>} : vector<16x16xbf16>, vector<16x128xbf16>, vector<16x128xf32> -> vector<16x128xf32>
      %19 = arith.index_cast %arg1 : i32 to index
      %c0_11 = arith.constant 0 : index
      %c0_12 = arith.constant 0 : index
      %20 = vector.load %arg7[%19, %c0_11, %c0_12] : memref<1x16x128xf32, #tpu.memory_space<vmem>>, vector<1x16x128xf32>
      %21 = vector.shape_cast %20 : vector<1x16x128xf32> to vector<16x128xf32>
      %22 = vector.shape_cast %18 : vector<16x128xf32> to vector<1x16x128xf32>
      tpu.vector_store %arg7[%19, %c0_11, %c0_12], %22 {strides = array<i32>} : memref<1x16x128xf32, #tpu.memory_space<vmem>>, vector<1x16x128xf32>,
      %23 = arith.mulf %18, %18 : vector<16x128xf32>
      %c0_13 = arith.constant 0 : index
      %c0_14 = arith.constant 0 : index
      %24 = vector.load %arg8[%c0_13, %c0_14] : memref<16x128xf32, #tpu.memory_space<vmem>>, vector<16x128xf32>
      %25 = arith.addf %24, %18 : vector<16x128xf32>
      %c0_15 = arith.constant 0 : index
      %c0_16 = arith.constant 0 : index
      %26 = vector.load %arg8[%c0_15, %c0_16] : memref<16x128xf32, #tpu.memory_space<vmem>>, vector<16x128xf32>
      tpu.vector_store %arg8[%c0_15, %c0_16], %25 {strides = array<i32>} : memref<16x128xf32, #tpu.memory_space<vmem>>, vector<16x128xf32>,
      %c0_17 = arith.constant 0 : index
      %c0_18 = arith.constant 0 : index
      %27 = vector.load %arg9[%c0_17, %c0_18] : memref<16x128xf32, #tpu.memory_space<vmem>>, vector<16x128xf32>
      %28 = arith.addf %27, %23 : vector<16x128xf32>
      %c0_19 = arith.constant 0 : index
      %c0_20 = arith.constant 0 : index
      %29 = vector.load %arg9[%c0_19, %c0_20] : memref<16x128xf32, #tpu.memory_space<vmem>>, vector<16x128xf32>
      tpu.vector_store %arg9[%c0_19, %c0_20], %28 {strides = array<i32>} : memref<16x128xf32, #tpu.memory_space<vmem>>, vector<16x128xf32>,
    } else {
    }
    %c1_i32 = arith.constant 1 : i32
    %8 = arith.cmpi eq, %arg0, %c1_i32 : i32
    %c0_i32_4 = arith.constant 0 : i32
    %9 = arith.cmpi eq, %arg1, %c0_i32_4 : i32
    %10 = arith.andi %8, %9 : i1
    %11 = arith.extui %10 : i1 to i32
    %c0_i32_5 = arith.constant 0 : i32
    %12 = arith.cmpi ne, %11, %c0_i32_5 : i32
    scf.if %12 {
      %c0 = arith.constant 0 : index
      %c0_8 = arith.constant 0 : index
      %16 = vector.load %arg8[%c0, %c0_8] : memref<16x128xf32, #tpu.memory_space<vmem>>, vector<16x128xf32>
      %cst = arith.constant dense<0.000000e+00> : vector<16xf32>
      %17 = vector.multi_reduction <add>, %16, %cst [1] : vector<16x128xf32> to vector<16xf32>
      %18 = vector.shape_cast %17 : vector<16xf32> to vector<16x1xf32>
      %c0_9 = arith.constant 0 : index
      %c0_10 = arith.constant 0 : index
      %19 = vector.load %arg9[%c0_9, %c0_10] : memref<16x128xf32, #tpu.memory_space<vmem>>, vector<16x128xf32>
      %cst_11 = arith.constant dense<0.000000e+00> : vector<16xf32>
      %20 = vector.multi_reduction <add>, %19, %cst_11 [1] : vector<16x128xf32> to vector<16xf32>
      %21 = vector.shape_cast %20 : vector<16xf32> to vector<16x1xf32>
      %cst_12 = arith.constant 3.125000e-02 : f32
      %22 = vector.broadcast %cst_12 : f32 to vector<16x1xf32>
      %23 = arith.mulf %18, %22 : vector<16x1xf32>
      %cst_13 = arith.constant 3.125000e-02 : f32
      %24 = vector.broadcast %cst_13 : f32 to vector<16x1xf32>
      %25 = arith.mulf %21, %24 : vector<16x1xf32>
      %26 = arith.mulf %23, %23 : vector<16x1xf32>
      %27 = arith.subf %25, %26 : vector<16x1xf32>
      %c0_14 = arith.constant 0 : index
      %c0_15 = arith.constant 0 : index
      %28 = vector.load %arg4[%c0_14, %c0_15] : memref<16x1xf32, #tpu.memory_space<vmem>>, vector<16x1xf32>
      %cst_16 = arith.constant 9.99999974E-6 : f32
      %29 = vector.broadcast %cst_16 : f32 to vector<16x1xf32>
      %30 = arith.addf %27, %29 : vector<16x1xf32>
      %31 = math.rsqrt %30 : vector<16x1xf32>
      %32 = arith.mulf %28, %31 : vector<16x1xf32>
      %c0_17 = arith.constant 0 : index
      %c0_18 = arith.constant 0 : index
      %33 = vector.load %arg10[%c0_17, %c0_18] : memref<16x1xf32, #tpu.memory_space<vmem>>, vector<16x1xf32>
      tpu.vector_store %arg10[%c0_17, %c0_18], %32 {strides = array<i32>} : memref<16x1xf32, #tpu.memory_space<vmem>>, vector<16x1xf32>,
      %c0_19 = arith.constant 0 : index
      %c0_20 = arith.constant 0 : index
      %34 = vector.load %arg5[%c0_19, %c0_20] : memref<16x1xf32, #tpu.memory_space<vmem>>, vector<16x1xf32>
      %35 = arith.mulf %23, %32 : vector<16x1xf32>
      %36 = arith.subf %34, %35 : vector<16x1xf32>
      %c0_21 = arith.constant 0 : index
      %c0_22 = arith.constant 0 : index
      %37 = vector.load %arg11[%c0_21, %c0_22] : memref<16x1xf32, #tpu.memory_space<vmem>>, vector<16x1xf32>
      tpu.vector_store %arg11[%c0_21, %c0_22], %36 {strides = array<i32>} : memref<16x1xf32, #tpu.memory_space<vmem>>, vector<16x1xf32>,
    } else {
    }
    %c1_i32_6 = arith.constant 1 : i32
    %13 = arith.cmpi eq, %arg0, %c1_i32_6 : i32
    %14 = arith.extui %13 : i1 to i32
    %c0_i32_7 = arith.constant 0 : i32
    %15 = arith.cmpi ne, %14, %c0_i32_7 : i32
    scf.if %15 {
      %16 = arith.index_cast %arg1 : i32 to index
      %c0 = arith.constant 0 : index
      %c0_8 = arith.constant 0 : index
      %17 = vector.load %arg7[%16, %c0, %c0_8] : memref<1x16x128xf32, #tpu.memory_space<vmem>>, vector<1x16x128xf32>
      %18 = vector.shape_cast %17 : vector<1x16x128xf32> to vector<16x128xf32>
      %c0_9 = arith.constant 0 : index
      %c0_10 = arith.constant 0 : index
      %19 = vector.load %arg10[%c0_9, %c0_10] : memref<16x1xf32, #tpu.memory_space<vmem>>, vector<16x1xf32>
      %20 = vector.broadcast %19 : vector<16x1xf32> to vector<16x128xf32>
      %21 = arith.mulf %18, %20 : vector<16x128xf32>
      %c0_11 = arith.constant 0 : index
      %c0_12 = arith.constant 0 : index
      %22 = vector.load %arg11[%c0_11, %c0_12] : memref<16x1xf32, #tpu.memory_space<vmem>>, vector<16x1xf32>
      %23 = vector.broadcast %22 : vector<16x1xf32> to vector<16x128xf32>
      %24 = arith.addf %21, %23 : vector<16x128xf32>
      %cst = arith.constant 0.000000e+00 : f32
      %25 = vector.broadcast %cst : f32 to vector<16x128xf32>
      %26 = arith.maximumf %24, %25 : vector<16x128xf32>
      %c0_13 = arith.constant 0 : index
      %c0_14 = arith.constant 0 : index
      %27 = vector.load %arg6[%c0_13, %c0_14] : memref<16x128xf32, #tpu.memory_space<vmem>>, vector<16x128xf32>
      tpu.vector_store %arg6[%c0_13, %c0_14], %26 {strides = array<i32>} : memref<16x128xf32, #tpu.memory_space<vmem>>, vector<16x128xf32>,
    } else {
    }
    return
  }
  func.func @transform_0(%arg0: i32, %arg1: i32) -> (i32, i32) {
    %c1_i32 = arith.constant 1 : i32
    %0 = arith.subi %c1_i32, %arg0 : i32
    %1 = arith.muli %0, %arg1 : i32
    %c0_i32 = arith.constant 0 : i32
    %c0_i32_0 = arith.constant 0 : i32
    return %c0_i32, %1 : i32, i32
  }
  func.func @transform_1(%arg0: i32, %arg1: i32) -> (i32, i32) {
    %c0_i32 = arith.constant 0 : i32
    %c0_i32_0 = arith.constant 0 : i32
    %c0_i32_1 = arith.constant 0 : i32
    return %c0_i32, %c0_i32_0 : i32, i32
  }
  func.func @transform_2(%arg0: i32, %arg1: i32) -> (i32, i32) {
    %c0_i32 = arith.constant 0 : i32
    %c0_i32_0 = arith.constant 0 : i32
    %c0_i32_1 = arith.constant 0 : i32
    return %c0_i32, %c0_i32_0 : i32, i32
  }
  func.func @transform_3(%arg0: i32, %arg1: i32) -> (i32, i32) {
    %c0_i32 = arith.constant 0 : i32
    %c0_i32_0 = arith.constant 0 : i32
    %c0_i32_1 = arith.constant 0 : i32
    return %c0_i32, %c0_i32_0 : i32, i32
  }
  func.func @transform_4(%arg0: i32, %arg1: i32) -> (i32, i32) {
    %0 = arith.muli %arg0, %arg1 : i32
    %c0_i32 = arith.constant 0 : i32
    %c0_i32_0 = arith.constant 0 : i32
    return %c0_i32, %0 : i32, i32
  }
}

</mosaic_0001>

<llo_original>
// kernel: conv_block_forward.1
$region0: #{conv_block_forward.1}
  #allocation0 [shape = 'u32[]', space=smem, size = 0x4, offset = 0x4, fixed_abs, tag = 'smem constant byte address 0x4 - core index']
  #allocation1 [shape = 'u32[144,128]{1,0:T(1,128)}', space=vmem, size = 0x12000, scoped, tag = 'internal scratch']
  #allocation2 [shape = 'f32[1,16,128]{2,1,0:T(8,128)}', space=vmem, size = 0x2000, scoped, tag = 'scratch operand']
  #allocation3 [shape = 'f32[16,128]{1,0:T(8,128)}', space=vmem, size = 0x2000, scoped, tag = 'scratch operand']
  #allocation4 [shape = 'f32[16,128]{1,0:T(8,128)}', space=vmem, size = 0x2000, scoped, tag = 'scratch operand']
  #allocation5 [shape = 'f32[16,1]{1,0:T(8,128)}', space=vmem, size = 0x2000, scoped, tag = 'scratch operand']
  #allocation6 [shape = 'f32[16,1]{1,0:T(8,128)}', space=vmem, size = 0x2000, scoped, tag = 'scratch operand']
  %s0 = inlined_call_operand.vmem [shape: bf16[16,128], index: 0, kind: input, shape index: {}]
  %s1 = inlined_call_operand.vmem [shape: bf16[16,16], index: 1, kind: input, shape index: {}]
  %s2 = inlined_call_operand.vmem [shape: f32[16,1], index: 2, kind: input, shape index: {}]
  %s3 = inlined_call_operand.vmem [shape: f32[16,1], index: 3, kind: input, shape index: {}]
  %s4 = inlined_call_operand.vmem [shape: f32[16,128], index: 4, kind: output, shape index: {}]
  %s5 = sld [smem:[#allocation0]]
  $region65: #{conv_block_forward.1} parent=0
    _
  %s7 = ssub.s32 1, %s5
  %s8 = scalar_select 0, %s7, %s5
  loop: start=0, step=1, limit=4
  $region2: #{conv_block_forward.1} parent=0 // loop_pre_header
    _
  $region3: #{conv_block_forward.1} parent=0 // loop_header
    %s10 = sphi 0, %s14
    %p11 = scmp.ge.s32.totalorder %s10, 4
    %s17 = sphi 0, %s29
    %s18 = sphi 0, %s25
    %s19 = sphi 0, %s17
    %s20 = sphi 0, %s18
    %s21 = sphi 0, %s19
    %s22 = sphi 0, %s20
    %s36 = sphi 0, %s38
    %s39 = sphi 0, %s36
    %s40 = sphi 0, %s39
    %s56 = sphi 0, %s40
    %s60 = sphi 0, %s60
    %s62 = sphi 0, %s60
    %s63 = sphi 0, %s62
    %s77 = sphi 0, %s63
    %s81 = sphi 0, %s81
    %s83 = sphi 0, %s81
    %s84 = sphi 0, %s83
    %s98 = sphi 0, %s84
    %s102 = sphi 0, %s102
    %s104 = sphi 0, %s102
    %s105 = sphi 0, %s104
    %s119 = sphi 0, %s105
    %s127 = sphi 0, %s129
    %s130 = sphi 0, %s127
    %s131 = sphi 0, %s130
    %s147 = sphi 0, %s131
  $region4: #{conv_block_forward.1} parent=0 // loop_header_branch
    %13 = sbr.rel (%p11) target = $region8
  $region5: #{conv_block_forward.1} parent=0 // loop_body
    %s15 = ssub.s32 %s10, 1
    %s16 = ssub.s32 %s10, 2
    %s23 = sadd.s32 1, %s18
    %p24 = scmp.ge.s32.totalorder %s23, 1
    %s25 = scalar_select %p24, 0, %s23
    %s26 = sadd.s32 1, %s17
    %s27 = scalar_select %p24, %s26, %s17
    %p28 = scmp.ge.s32.totalorder %s27, 2
    %s29 = scalar_select %p28, 0, %s27
    %s30 = ssub.s32 1, %s17
    %s31 = smul.u32 %s30, %s18
    %s32 = ssub.s32 1, %s29
    %s33 = smul.u32 %s32, %s25
    %s34 = ssub.s32 %s31, %s33
    %p35 = scmp.eq.s32.totalorder %s34, 0
    %s37 = sadd.s32 %s36, 1
    %s38 = scalar_select %p35, %s36, %s37
    %p41 = pneg %p35
    %p42 = scmp.eq.s32.totalorder %s10, 1
    %p43 = por %p41, %p42
    %p44 = scmp.ne.s32.totalorder %s36, %s39
    %p45 = scmp.eq.s32.totalorder %s10, 0
    %p46 = por %p44, %p45
    %p47 = scmp.ne.s32.totalorder %s36, %s39
    %p48 = scmp.eq.s32.totalorder %s15, 1
    %p49 = por %p47, %p48
    %p50 = scmp.ne.s32.totalorder %s39, %s40
    %p51 = scmp.eq.s32.totalorder %s15, 0
    %p52 = por %p50, %p51
    %p53 = scmp.ne.s32.totalorder %s39, %s40
    %p54 = scmp.eq.s32.totalorder %s16, 1
    %p55 = por %p53, %p54
    %p57 = scmp.ne.s32.totalorder %s40, %s56
    %p58 = scmp.eq.s32.totalorder %s16, 0
    %p59 = por %p57, %p58
    %s61 = sadd.s32 %s60, 1
    %p64 = scmp.eq.s32.totalorder %s10, 1
    %p65 = scmp.ne.s32.totalorder %s60, %s62
    %p66 = scmp.eq.s32.totalorder %s10, 0
    %p67 = por %p65, %p66
    %p68 = scmp.ne.s32.totalorder %s60, %s62
    %p69 = scmp.eq.s32.totalorder %s15, 1
    %p70 = por %p68, %p69
    %p71 = scmp.ne.s32.totalorder %s62, %s63
    %p72 = scmp.eq.s32.totalorder %s15, 0
    %p73 = por %p71, %p72
    %p74 = scmp.ne.s32.totalorder %s62, %s63
    %p75 = scmp.eq.s32.totalorder %s16, 1
    %p76 = por %p74, %p75
    %p78 = scmp.ne.s32.totalorder %s63, %s77
    %p79 = scmp.eq.s32.totalorder %s16, 0
    %p80 = por %p78, %p79
    %s82 = sadd.s32 %s81, 1
    %p85 = scmp.eq.s32.totalorder %s10, 1
    %p86 = scmp.ne.s32.totalorder %s81, %s83
    %p87 = scmp.eq.s32.totalorder %s10, 0
    %p88 = por %p86, %p87
    %p89 = scmp.ne.s32.totalorder %s81, %s83
    %p90 = scmp.eq.s32.totalorder %s15, 1
    %p91 = por %p89, %p90
    %p92 = scmp.ne.s32.totalorder %s83, %s84
    %p93 = scmp.eq.s32.totalorder %s15, 0
    %p94 = por %p92, %p93
    %p95 = scmp.ne.s32.totalorder %s83, %s84
    %p96 = scmp.eq.s32.totalorder %s16, 1
    %p97 = por %p95, %p96
    %p99 = scmp.ne.s32.totalorder %s84, %s98
    %p100 = scmp.eq.s32.totalorder %s16, 0
    %p101 = por %p99, %p100
    %s103 = sadd.s32 %s102, 1
    %p106 = scmp.eq.s32.totalorder %s10, 1
    %p107 = scmp.ne.s32.totalorder %s102, %s104
    %p108 = scmp.eq.s32.totalorder %s10, 0
    %p109 = por %p107, %p108
    %p110 = scmp.ne.s32.totalorder %s102, %s104
    %p111 = scmp.eq.s32.totalorder %s15, 1
    %p112 = por %p110, %p111
    %p113 = scmp.ne.s32.totalorder %s104, %s105
    %p114 = scmp.eq.s32.totalorder %s15, 0
    %p115 = por %p113, %p114
    %p116 = scmp.ne.s32.totalorder %s104, %s105
    %p117 = scmp.eq.s32.totalorder %s16, 1
    %p118 = por %p116, %p117
    %p120 = scmp.ne.s32.totalorder %s105, %s119
    %p121 = scmp.eq.s32.totalorder %s16, 0
    %p122 = por %p120, %p121
    %s123 = smul.u32 %s17, %s18
    %s124 = smul.u32 %s29, %s25
    %s125 = ssub.s32 %s123, %s124
    %p126 = scmp.eq.s32.totalorder %s125, 0
    %s128 = sadd.s32 %s127, 1
    %s129 = scalar_select %p126, %s127, %s128
    %p132 = pneg %p126
    %p133 = scmp.eq.s32.totalorder %s10, 1
    %p134 = por %p132, %p133
    %p135 = scmp.ne.s32.totalorder %s127, %s130
    %p136 = scmp.eq.s32.totalorder %s10, 0
    %p137 = por %p135, %p136
    %p138 = scmp.ne.s32.totalorder %s127, %s130
    %p139 = scmp.eq.s32.totalorder %s15, 1
    %p140 = por %p138, %p139
    %p141 = scmp.ne.s32.totalorder %s130, %s131
    %p142 = scmp.eq.s32.totalorder %s15, 0
    %p143 = por %p141, %p142
    %p144 = scmp.ne.s32.totalorder %s130, %s131
    %p145 = scmp.eq.s32.totalorder %s16, 1
    %p146 = por %p144, %p145
    %p148 = scmp.ne.s32.totalorder %s131, %s147
    %p149 = scmp.eq.s32.totalorder %s16, 0
    %p150 = por %p148, %p149
    %p151 = scmp.le.s32.totalorder 1, %s10
    %p152 = scmp.lt.s32.totalorder %s10, 3
    %p153 = pnand %p151, %p152
    %p154 = pneg %p153
    // Predicated region
    $region9: #{conv_block_forward.1} parent=5 // pred_check
      _
    $region10: #{conv_block_forward.1} parent=5 // pred_check_branch
      %156 = sbr.rel (%p153) target = $region12
    $region11: #{conv_block_forward.1} parent=5 // pred_region
      %s157 = ssub.s32 %s10, 1
      // Predicated region
      $region13: #{conv_block_forward.1} parent=11 // pred_check
        %p158 = pneg %p73
      $region14: #{conv_block_forward.1} parent=11 // pred_check_branch
        %160 = sbr.rel (%p158) target = $region16
      $region15: #{conv_block_forward.1} parent=11 // pred_region
        _
      $region16: #{conv_block_forward.1} parent=11 // pred_fallthru
        _
      // Predicated region
      $region17: #{conv_block_forward.1} parent=11 // pred_check
        %p161 = pneg %p94
      $region18: #{conv_block_forward.1} parent=11 // pred_check_branch
        %163 = sbr.rel (%p161) target = $region20
      $region19: #{conv_block_forward.1} parent=11 // pred_region
        _
      $region20: #{conv_block_forward.1} parent=11 // pred_fallthru
        _
      // Predicated region
      $region21: #{conv_block_forward.1} parent=11 // pred_check
        %p164 = pneg %p115
      $region22: #{conv_block_forward.1} parent=11 // pred_check_branch
        %166 = sbr.rel (%p164) target = $region24
      $region23: #{conv_block_forward.1} parent=11 // pred_region
        _
      $region24: #{conv_block_forward.1} parent=11 // pred_fallthru
        _
    $region12: #{conv_block_forward.1} parent=5 // pred_fallthru
      _
    %p167 = scmp.lt.s32.totalorder %s10, 2
    // Predicated region
    $region25: #{conv_block_forward.1} parent=5 // pred_check
      %p168 = pneg %p167
    $region26: #{conv_block_forward.1} parent=5 // pred_check_branch
      %170 = sbr.rel (%p168) target = $region28
    $region27: #{conv_block_forward.1} parent=5 // pred_region
      // Predicated region
      $region29: #{conv_block_forward.1} parent=27 // pred_check
        %p171 = pneg %p46
      $region30: #{conv_block_forward.1} parent=27 // pred_check_branch
        %173 = sbr.rel (%p171) target = $region32
      $region31: #{conv_block_forward.1} parent=27 // pred_region
        %s174 = ssub.s32 1, %s17
        %s175 = smul.u32 %s174, %s18
        %p176 = scmp.lt.s32.totalorder %s175, 0
        %s177 = scalar_select %p176, %s175, 0
        %s178 = smul.addr %s177, 4
        %s179 = scalar_lea.vmem %s0, %s178
        %s180 = ssub.s32 1, %s17
        %s181 = smul.u32 %s180, %s18
      $region32: #{conv_block_forward.1} parent=27 // pred_fallthru
        _
    $region28: #{conv_block_forward.1} parent=5 // pred_fallthru
      _
    %p182 = scmp.le.s32.totalorder 1, %s10
    %p183 = scmp.lt.s32.totalorder %s10, 3
    %p184 = pnand %p182, %p183
    %p185 = pneg %p184
    // Predicated region
    $region33: #{conv_block_forward.1} parent=5 // pred_check
      _
    $region34: #{conv_block_forward.1} parent=5 // pred_check_branch
      %187 = sbr.rel (%p184) target = $region36
    $region35: #{conv_block_forward.1} parent=5 // pred_region
      %s188 = ssub.s32 %s10, 1
      %s189 = ssub.s32 1, %s19
      %s190 = smul.u32 %s189, %s20
      %p191 = scmp.lt.s32.totalorder %s190, 0
      %s192 = scalar_select %p191, %s190, 0
      %s193 = smul.addr %s192, 4
      %s194 = scalar_lea.vmem %s0, %s193
      %p195 = pneg %p52
      %p196 = pneg %p49
      %p197 = pneg %p73
      %p198 = pneg %p70
      %p199 = pneg %p94
      %p200 = pneg %p91
      %p201 = pneg %p115
      %p202 = pneg %p112
      %p203 = pneg %p143
      %p204 = pneg %p140
      %s205 = smul.u32 %s19, %s20
      %p206 = scmp.lt.s32.totalorder %s205, 0
      %s207 = scalar_select %p206, %s205, 0
      %s208 = smul.addr %s207, 8
      %s209 = scalar_lea.vmem %s4, %s208
      %s210 = ssub.s32 1, %s19
      %s211 = smul.u32 %s210, %s20
      %p212 = scmp.lt.s32.totalorder %s211, 0
      %s213 = scalar_select %p212, %s211, 0
      %s214 = smul.addr %s213, 4
      %s215 = scalar_lea.vmem %s0, %s214
      %s216 = ssub.s32 1, %s19
      %s217 = smul.u32 %s216, %s20
      %s218 = smul.u32 %s19, %s20
      %p219 = scmp.lt.s32.totalorder %s218, 0
      %s220 = scalar_select %p219, %s218, 0
      %s221 = smul.addr %s220, 8
      %s222 = scalar_lea.vmem %s4, %s221
      %s223 = smul.u32 %s19, %s20
      %p225 = scmp.eq.s32.totalorder %s19, 0
      %p226 = scmp.eq.s32.totalorder %s20, 0
      %p227 = pnand %p225, %p226
      %p228 = pneg %p227
      // Predicated region
      $region37: #{conv_block_forward.1} parent=35 // pred_check
        _
      $region38: #{conv_block_forward.1} parent=35 // pred_check_branch
        %230 = sbr.rel (%p227) target = $region40
      $region39: #{conv_block_forward.1} parent=35 // pred_region
        %231 = vst [vmem:[#allocation3] sm:$0xff] 0.0
        %232 = vst [vmem:[#allocation3 + $0x8] sm:$0xff] 0.0
        %233 = vst [vmem:[#allocation4] sm:$0xff] 0.0
        %234 = vst [vmem:[#allocation4 + $0x8] sm:$0xff] 0.0
      $region40: #{conv_block_forward.1} parent=35 // pred_fallthru
        _
      // Predicated region
      $region41: #{conv_block_forward.1} parent=35 // pred_check
        %p235 = pneg %p225
      $region42: #{conv_block_forward.1} parent=35 // pred_check_branch
        %237 = sbr.rel (%p235) target = $region44
      $region43: #{conv_block_forward.1} parent=35 // pred_region
        %v238 = vld [vmem:[%s1] sm:$0xf]
        %v239 = vld [vmem:[%s1 + $0x4] sm:$0xf]
        %v240 = vld [vmem:[%s215] sm:$0xf]
        %v241 = vld [vmem:[%s215 + $0x4] sm:$0xf]
        %v244 = vunpack.c.l.b16 %v238
        %v245 = vunpack.c.l.b16 %v239
        %v246 = vpack.c.b16 %v245, %v244
        %v249 = vunpack.c.l.b16 %v240
        %v250 = vunpack.c.l.b16 %v241
        %v251 = vpack.c.b16 %v250, %v249
        %vm253 = vcmask 130048
        %v255 = vsel %vm253, %v246, 0
        %257 = vmatprep.subr.bf16.mxu0 0
        %258 = vmatpush1.bf16.msra.mxu0 %v251
        %259 = vmatprep.subr.bf16.mxu0 0
        %260 = vmatpush1.bf16.msra.mxu0 0
        %261 = vmatprep.subr.bf16.mxu0 0
        %262 = vmatpush1.bf16.msra.mxu0 0
        %263 = vmatprep.subr.bf16.mxu0 0
        %264 = vmatpush1.bf16.msra.mxu0 0
        %265 = vmatprep.subr.bf16.mxu0 0
        %266 = vmatpush1.bf16.msra.mxu0 0
        %267 = vmatprep.subr.bf16.mxu0 0
        %268 = vmatpush1.bf16.msra.mxu0 0
        %269 = vmatprep.subr.bf16.mxu0 0
        %270 = vmatpush1.bf16.msra.mxu0 0
        %271 = vmatprep.subr.bf16.mxu0 0
        %272 = vmatpush1.bf16.msra.mxu0 0
        %273 = vmatprep.subr.bf16.mxu0 0
        %274 = vmatpush1.bf16.msra.mxu0 0
        %275 = vmatprep.subr.bf16.mxu0 0
        %276 = vmatpush1.bf16.msra.mxu0 0
        %277 = vmatprep.subr.bf16.mxu0 0
        %278 = vmatpush1.bf16.msra.mxu0 0
        %279 = vmatprep.subr.bf16.mxu0 0
        %280 = vmatpush1.bf16.msra.mxu0 0
        %281 = vmatprep.subr.bf16.mxu0 0
        %282 = vmatpush1.bf16.msra.mxu0 0
        %283 = vmatprep.subr.bf16.mxu0 0
        %284 = vmatpush1.bf16.msra.mxu0 0
        %285 = vmatprep.subr.bf16.mxu0 0
        %286 = vmatpush1.bf16.msra.mxu0 0
        %287 = vmatprep.subr.bf16.mxu0 0
        %288 = vmatpush1.bf16.msra.mxu0 0
        %289 = vmatprep.mubr.bf16.mxu0 0
        %290 = vmatmul.mubr.bf16.gmra.mrb[0].mxu0 %v255
        %v291 = vpop.f32.mrb[0].mxu0
        %v292 = vadd.f32 0.0, %v291
        %v293 = vpop.f32.mrb[0].mxu0
        %v294 = vpop.f32.mrb[0].mxu0
        %v295 = vadd.f32 0.0, %v294
        %v296 = vpop.f32.mrb[0].mxu0
        %297 = vdwg.mxu0
        %s298 = smul.u32 %s20, 16
        %s299 = scalar_lea.vmem [#allocation2], %s298
        %300 = vst [vmem:[%s299] sm:$0xff] %v292
        %301 = vst [vmem:[%s299 + $0x8] sm:$0xff] %v295
        %v302 = vmul.f32 %v292, %v292
        %v303 = vmul.f32 %v295, %v295
        %v304 = vld [vmem:[#allocation3] sm:$0xff]
        %v305 = vld [vmem:[#allocation3 + $0x8] sm:$0xff]
        %v306 = vadd.f32 %v304, %v292
        %v307 = vadd.f32 %v305, %v295
        %308 = vst [vmem:[#allocation3] sm:$0xff] %v306
        %309 = vst [vmem:[#allocation3 + $0x8] sm:$0xff] %v307
        %v310 = vld [vmem:[#allocation4] sm:$0xff]
        %v311 = vld [vmem:[#allocation4 + $0x8] sm:$0xff]
        %v312 = vadd.f32 %v310, %v302
        %v313 = vadd.f32 %v311, %v303
        %314 = vst [vmem:[#allocation4] sm:$0xff] %v312
        %315 = vst [vmem:[#allocation4 + $0x8] sm:$0xff] %v313
      $region44: #{conv_block_forward.1} parent=35 // pred_fallthru
        _
      %p316 = scmp.eq.s32.totalorder %s19, 1
      %p317 = pnand %p316, %p226
      %p318 = pneg %p317
      // Predicated region
      $region45: #{conv_block_forward.1} parent=35 // pred_check
        _
      $region46: #{conv_block_forward.1} parent=35 // pred_check_branch
        %320 = sbr.rel (%p317) target = $region48
      $region47: #{conv_block_forward.1} parent=35 // pred_region
        %v321 = vld [vmem:[#allocation3] sm:$0xff]
        %v322 = vld [vmem:[#allocation3 + $0x8] sm:$0xff]
        %323 = vadd.xlane.f32.xlu0 %v321
        %v324 = vpop.xlane.xlu0 %323
        %325 = vadd.xlane.f32.xlu0 %v322
        %v326 = vpop.xlane.xlu0 %325
        %v327 = vld [vmem:[#allocation4] sm:$0xff]
        %v328 = vld [vmem:[#allocation4 + $0x8] sm:$0xff]
        %329 = vadd.xlane.f32.xlu0 %v327
        %v330 = vpop.xlane.xlu0 %329
        %331 = vadd.xlane.f32.xlu0 %v328
        %v332 = vpop.xlane.xlu0 %331
        %v333 = vmul.f32 %v324, 0.03125
        %v334 = vmul.f32 %v326, 0.03125
        %v335 = vmul.f32 %v330, 0.03125
        %v336 = vmul.f32 %v332, 0.03125
        %v337 = vmul.f32 %v333, %v333
        %v338 = vmul.f32 %v334, %v334
        %v339 = vsub.f32 %v335, %v337
        %v340 = vsub.f32 %v336, %v338
        %v341 = vld [vmem:[%s2] sm:$0xff]
        %v342 = vld [vmem:[%s2 + $0x8] sm:$0xff]
        %v343 = vadd.f32 %v339, 1e-05
        %v344 = vadd.f32 %v340, 1e-05
        %v345 = vrsqrt.pop %v343
        %v346 = vrsqrt.pop %v344
        %v347 = vmul.f32 %v341, %v345
        %v348 = vmul.f32 %v342, %v346
        %vm349 = vcmask 7168
        %350 = vst.msk [vmem:[#allocation5] sm:$0xff] %vm349, %v347
        %351 = vst.msk [vmem:[#allocation5 + $0x8] sm:$0xff] %vm349, %v348
        %v352 = vld [vmem:[%s3] sm:$0xff]
        %v353 = vld [vmem:[%s3 + $0x8] sm:$0xff]
        %v354 = vmul.f32 %v333, %v347
        %v355 = vmul.f32 %v334, %v348
        %v356 = vsub.f32 %v352, %v354
        %v357 = vsub.f32 %v353, %v355
        %358 = vst.msk [vmem:[#allocation6] sm:$0xff] %vm349, %v356
        %359 = vst.msk [vmem:[#allocation6 + $0x8] sm:$0xff] %vm349, %v357
      $region48: #{conv_block_forward.1} parent=35 // pred_fallthru
        _
      // Predicated region
      $region49: #{conv_block_forward.1} parent=35 // pred_check
        %p360 = pneg %p316
      $region50: #{conv_block_forward.1} parent=35 // pred_check_branch
        %362 = sbr.rel (%p360) target = $region52
      $region51: #{conv_block_forward.1} parent=35 // pred_region
        %s363 = smul.u32 %s20, 16
        %s364 = scalar_lea.vmem [#allocation2], %s363
        %v365 = vld [vmem:[%s364] sm:$0xff]
        %v366 = vld [vmem:[%s364 + $0x8] sm:$0xff]
        %v367 = vld [vmem:[#allocation5] sm:$0xff]
        %v368 = vld [vmem:[#allocation5 + $0x8] sm:$0xff]
        %370 = vset.pattern.permute.xlu0 0
        %371 = vperm.xlu0 %370, %v367
        %v372 = vpop.permute.xlu0 %371
        %375 = vset.pattern.permute.xlu0 0
        %376 = vperm.xlu0 %375, %v368
        %v377 = vpop.permute.xlu0 %376
        %v379 = vmul.f32 %v365, %v372
        %v380 = vmul.f32 %v366, %v377
        %v381 = vld [vmem:[#allocation6] sm:$0xff]
        %v382 = vld [vmem:[#allocation6 + $0x8] sm:$0xff]
        %384 = vset.pattern.permute.xlu0 0
        %385 = vperm.xlu0 %384, %v381
        %v386 = vpop.permute.xlu0 %385
        %389 = vset.pattern.permute.xlu0 0
        %390 = vperm.xlu0 %389, %v382
        %v391 = vpop.permute.xlu0 %390
        %v393 = vadd.f32 %v379, %v386
        %v394 = vadd.f32 %v380, %v391
        %v395 = vmax.f32 %v393, 0.0
        %v396 = vmax.f32 %v394, 0.0
        %397 = vst [vmem:[%s222] sm:$0xff] %v395
        %398 = vst [vmem:[%s222 + $0x8] sm:$0xff] %v396
      $region52: #{conv_block_forward.1} parent=35 // pred_fallthru
        _
      %s399 = smul.u32 %s19, %s20
      %p400 = scmp.lt.s32.totalorder %s399, 0
      %s401 = scalar_select %p400, %s399, 0
      %s402 = smul.addr %s401, 8
      %s403 = scalar_lea.vmem %s4, %s402
      // Predicated region
      $region53: #{conv_block_forward.1} parent=35 // pred_check
        %p404 = pneg %p140
      $region54: #{conv_block_forward.1} parent=35 // pred_check_branch
        %406 = sbr.rel (%p404) target = $region56
      $region55: #{conv_block_forward.1} parent=35 // pred_region
        %s407 = smul.u32 %s19, %s20
      $region56: #{conv_block_forward.1} parent=35 // pred_fallthru
        _
    $region36: #{conv_block_forward.1} parent=5 // pred_fallthru
      _
    %p408 = scmp.le.s32.totalorder 2, %s10
    // Predicated region
    $region57: #{conv_block_forward.1} parent=5 // pred_check
      %p409 = pneg %p408
    $region58: #{conv_block_forward.1} parent=5 // pred_check_branch
      %411 = sbr.rel (%p409) target = $region60
    $region59: #{conv_block_forward.1} parent=5 // pred_region
      %s412 = ssub.s32 %s10, 2
      // Predicated region
      $region61: #{conv_block_forward.1} parent=59 // pred_check
        %p413 = pneg %p146
      $region62: #{conv_block_forward.1} parent=59 // pred_check_branch
        %415 = sbr.rel (%p413) target = $region64
      $region63: #{conv_block_forward.1} parent=59 // pred_region
        %s416 = smul.u32 %s21, %s22
        %p417 = scmp.lt.s32.totalorder %s416, 0
        %s418 = scalar_select %p417, %s416, 0
        %s419 = smul.addr %s418, 8
        %s420 = scalar_lea.vmem %s4, %s419
      $region64: #{conv_block_forward.1} parent=59 // pred_fallthru
        _
    $region60: #{conv_block_forward.1} parent=5 // pred_fallthru
      _
  $region6: #{conv_block_forward.1} parent=0 // loop_footer
    %s14 = sadd.s32 1, %s10
  $region7: #{conv_block_forward.1} parent=0 // loop_footer_branch
    %9 = sbr.rel target = $region3
  $region8: #{conv_block_forward.1} parent=0 // loop_exit
    _

</llo_original>
